<compile_context>
chip_gen: v6e
topology: v6e:2x2x1
jax: 0.10.0
libtpu: 0.0.40
codegen_flags: <defaults>
</compile_context>

<pallas_src>
import functools

import jax
import jax.numpy as jnp
from jax.experimental import pallas as pl
from jax.experimental.pallas import tpu as pltpu


def _round_up(x, m):
    return (x + m - 1) // m * m


def _kd_loss_tile_kernel(s_ref, t_ref, rowsum_ref, *, inv_T):
    # One (tb, C) batch tile per grid step; all math in f32 in VMEM.
    s = s_ref[...].astype(jnp.float32) * inv_T
    t = t_ref[...].astype(jnp.float32) * inv_T

    # Student: only the log-partition is needed (log_softmax = s_shift - log_z_s).
    s_max = jnp.max(s, axis=-1, keepdims=True)
    s_shift = s - s_max
    log_z_s = jnp.log(jnp.sum(jnp.exp(s_shift), axis=-1, keepdims=True))

    # Teacher: softmax + its log-partition.
    t_max = jnp.max(t, axis=-1, keepdims=True)
    t_shift = t - t_max
    exp_t = jnp.exp(t_shift)
    z_t = jnp.sum(exp_t, axis=-1, keepdims=True)
    log_z_t = jnp.log(z_t)
    # Per-row reciprocal (EUP) + broadcast multiply instead of an elementwise divide.
    p_t = exp_t * pl.reciprocal(z_t, approx=False)

    # Fused KL(p_t || p_s) elementwise:
    #   p_t * (log_p_t - log_p_s) = p_t * ((t_shift - s_shift) + (log_z_s - log_z_t))
    kl = p_t * ((t_shift - s_shift) + (log_z_s - log_z_t))

    # Lane (class-axis) reduction only; the cross-tile reduction + scaling
    # happen once in the wrapper.
    rowsum_ref[...] = jnp.sum(kl, axis=-1, keepdims=True)


def kd_loss(s_out, t_out, kl_loss_factor=1.0, T=4.0, block_b=256):
    """Pallas implementation of KDLoss.forward. Inputs: (B, C) logits."""
    assert s_out.shape == t_out.shape and s_out.ndim == 2
    B, C = s_out.shape

    # Batch tile: sublane-aligned (multiple of 8), capped so that the
    # double-buffered input working set fits comfortably in scoped VMEM on
    # v5e / v6e / v7x (conservative 24 MiB budget).
    vmem_budget = 24 * 1024 * 1024
    bytes_per_row = 2 * 2 * C * 4  # 2 inputs x 2 pipeline buffers x f32
    max_tb = max(8, (vmem_budget // bytes_per_row) // 8 * 8)
    tb = min(_round_up(min(block_b, B), 8), max_tb)

    # Pad the batch to a multiple of the tile. All-zero logit rows are exactly
    # KL-neutral (uniform student and teacher -> per-row KL == 0), so padding
    # does not perturb the result; we still divide by the ORIGINAL B below.
    B_pad = _round_up(B, tb)
    if B_pad != B:
        pad = ((0, B_pad - B), (0, 0))
        s_out = jnp.pad(s_out, pad)
        t_out = jnp.pad(t_out, pad)
    num_tiles = B_pad // tb

    # TODO(synk): for very large C (vocab-level distillation) add a second grid
    # axis over class chunks with an online logsumexp instead of requiring a
    # full (tb, C) row block to fit in VMEM.

    kernel = functools.partial(_kd_loss_tile_kernel, inv_T=float(1.0 / T))
    row_sums = pl.pallas_call(
        kernel,
        out_shape=jax.ShapeDtypeStruct((B_pad, 1), jnp.float32),
        grid=(num_tiles,),
        in_specs=[
            pl.BlockSpec((tb, C), lambda i: (i, 0)),
            pl.BlockSpec((tb, C), lambda i: (i, 0)),
        ],
        out_specs=pl.BlockSpec((tb, 1), lambda i: (i, 0)),
        compiler_params=pltpu.CompilerParams(
            dimension_semantics=("parallel",),
        ),
    )(s_out, t_out)

    # 'batchmean' + T^2 + loss-factor scaling, applied exactly once.
    scale = jnp.float32(float(T) * float(T) * float(kl_loss_factor) / B)
    return jnp.sum(row_sums) * scale


def _kd_loss_ref(s_out, t_out, kl_loss_factor=1.0, T=4.0):
    # Pure-JAX reference for verification (also the preferred path for tiny shapes).
    s = s_out.astype(jnp.float32) / T
    t = t_out.astype(jnp.float32) / T
    log_p_s = jax.nn.log_softmax(s, axis=1)
    p_t = jax.nn.softmax(t, axis=1)
    log_p_t = jax.nn.log_softmax(t, axis=1)
    kl = jnp.sum(p_t * (log_p_t - log_p_s)) / s_out.shape[0]
    return kl * T * T * kl_loss_factor


if __name__ == "__main__":
    key = jax.random.PRNGKey(0)
    k1, k2 = jax.random.split(key)
    B, C = 64, 10  # CIFAR-10 style logits: 10 classes; B=64 exercises the batch grid
    s_out = jax.random.normal(k1, (B, C), dtype=jnp.float32) * 3.0
    t_out = jax.random.normal(k2, (B, C), dtype=jnp.float32) * 3.0

    loss = jax.block_until_ready(
        kd_loss(s_out, t_out, kl_loss_factor=1.0, T=4.0, block_b=16)
    )
    ref = _kd_loss_ref(s_out, t_out, kl_loss_factor=1.0, T=4.0)

    assert jnp.allclose(loss, ref, rtol=1e-5, atol=1e-5), (loss, ref)
    print("KERNEL_OK")
</pallas_src>

<mosaic_0001>
module attributes {stable_mosaic.version = 11 : i64} {
  func.func @_kd_loss_tile_kernel(%arg0: i32, %arg1: memref<16x10xf32, #tpu.memory_space<vmem>>, %arg2: memref<16x10xf32, #tpu.memory_space<vmem>>, %arg3: memref<16x1xf32, #tpu.memory_space<vmem>>) attributes {dimension_semantics = [#tpu.dimension_semantics<parallel>], iteration_bounds = array<i64: 4>, scalar_prefetch = 0 : i64, scratch_operands = 0 : i64, tpu.core_type = #tpu.core_type<tc>, window_params = [{transform_indices = @transform_0, window_bounds = array<i64: 16, 10>}, {transform_indices = @transform_1, window_bounds = array<i64: 16, 10>}, {transform_indices = @transform_2, window_bounds = array<i64: 16, 1>}]} {
    %c0 = arith.constant 0 : index
    %c0_0 = arith.constant 0 : index
    %0 = vector.load %arg1[%c0, %c0_0] : memref<16x10xf32, #tpu.memory_space<vmem>>, vector<16x10xf32>
    %cst = arith.constant 2.500000e-01 : f32
    %1 = vector.broadcast %cst : f32 to vector<16x10xf32>
    %2 = arith.mulf %0, %1 : vector<16x10xf32>
    %c0_1 = arith.constant 0 : index
    %c0_2 = arith.constant 0 : index
    %3 = vector.load %arg2[%c0_1, %c0_2] : memref<16x10xf32, #tpu.memory_space<vmem>>, vector<16x10xf32>
    %cst_3 = arith.constant 2.500000e-01 : f32
    %4 = vector.broadcast %cst_3 : f32 to vector<16x10xf32>
    %5 = arith.mulf %3, %4 : vector<16x10xf32>
    %cst_4 = arith.constant dense<0xFF800000> : vector<16xf32>
    %6 = vector.multi_reduction <maximumf>, %2, %cst_4 [1] : vector<16x10xf32> to vector<16xf32>
    %7 = vector.shape_cast %6 : vector<16xf32> to vector<16x1xf32>
    %8 = vector.broadcast %7 : vector<16x1xf32> to vector<16x10xf32>
    %9 = arith.subf %2, %8 : vector<16x10xf32>
    %10 = math.exp %9 : vector<16x10xf32>
    %cst_5 = arith.constant dense<0.000000e+00> : vector<16xf32>
    %11 = vector.multi_reduction <add>, %10, %cst_5 [1] : vector<16x10xf32> to vector<16xf32>
    %12 = vector.shape_cast %11 : vector<16xf32> to vector<16x1xf32>
    %13 = math.log %12 : vector<16x1xf32>
    %cst_6 = arith.constant dense<0xFF800000> : vector<16xf32>
    %14 = vector.multi_reduction <maximumf>, %5, %cst_6 [1] : vector<16x10xf32> to vector<16xf32>
    %15 = vector.shape_cast %14 : vector<16xf32> to vector<16x1xf32>
    %16 = vector.broadcast %15 : vector<16x1xf32> to vector<16x10xf32>
    %17 = arith.subf %5, %16 : vector<16x10xf32>
    %18 = math.exp %17 : vector<16x10xf32>
    %cst_7 = arith.constant dense<0.000000e+00> : vector<16xf32>
    %19 = vector.multi_reduction <add>, %18, %cst_7 [1] : vector<16x10xf32> to vector<16xf32>
    %20 = vector.shape_cast %19 : vector<16xf32> to vector<16x1xf32>
    %21 = math.log %20 : vector<16x1xf32>
    %22 = tpu.reciprocal %20 : vector<16x1xf32> -> vector<16x1xf32>
    %23 = vector.broadcast %22 : vector<16x1xf32> to vector<16x10xf32>
    %24 = arith.mulf %18, %23 : vector<16x10xf32>
    %25 = arith.subf %17, %9 : vector<16x10xf32>
    %26 = arith.subf %13, %21 : vector<16x1xf32>
    %27 = vector.broadcast %26 : vector<16x1xf32> to vector<16x10xf32>
    %28 = arith.addf %25, %27 : vector<16x10xf32>
    %29 = arith.mulf %24, %28 : vector<16x10xf32>
    %cst_8 = arith.constant dense<0.000000e+00> : vector<16xf32>
    %30 = vector.multi_reduction <add>, %29, %cst_8 [1] : vector<16x10xf32> to vector<16xf32>
    %31 = vector.shape_cast %30 : vector<16xf32> to vector<16x1xf32>
    %c0_9 = arith.constant 0 : index
    %c0_10 = arith.constant 0 : index
    %32 = vector.load %arg3[%c0_9, %c0_10] : memref<16x1xf32, #tpu.memory_space<vmem>>, vector<16x1xf32>
    tpu.vector_store %arg3[%c0_9, %c0_10], %31 {strides = array<i32>} : memref<16x1xf32, #tpu.memory_space<vmem>>, vector<16x1xf32>,
    return
  }
  func.func @transform_0(%arg0: i32) -> (i32, i32) {
    %c0_i32 = arith.constant 0 : i32
    %c0_i32_0 = arith.constant 0 : i32
    return %arg0, %c0_i32 : i32, i32
  }
  func.func @transform_1(%arg0: i32) -> (i32, i32) {
    %c0_i32 = arith.constant 0 : i32
    %c0_i32_0 = arith.constant 0 : i32
    return %arg0, %c0_i32 : i32, i32
  }
  func.func @transform_2(%arg0: i32) -> (i32, i32) {
    %c0_i32 = arith.constant 0 : i32
    %c0_i32_0 = arith.constant 0 : i32
    return %arg0, %c0_i32 : i32, i32
  }
}

</mosaic_0001>

<llo_original>
// kernel: tpu_custom_call.1
$region0: #{tpu_custom_call.1}
  #allocation0 [shape = 'u32[]', space=smem, size = 0x4, offset = 0x4, fixed_abs, tag = 'smem constant byte address 0x4 - core index']
  #allocation1 [shape = 'u32[144,128]{1,0:T(1,128)}', space=vmem, size = 0x12000, scoped, tag = 'internal scratch']
  %s0 = inlined_call_operand.vmem [shape: f32[64,10], index: 0, kind: input, shape index: {}]
  %s1 = inlined_call_operand.vmem [shape: f32[64,10], index: 1, kind: input, shape index: {}]
  %s2 = inlined_call_operand.vmem [shape: f32[64,1], index: 2, kind: output, shape index: {}]
  %s3 = sld [smem:[#allocation0]]
  $region41: #{tpu_custom_call.1} parent=0
    _
  %s5 = ssub.s32 1, %s3
  %s6 = scalar_select 0, %s5, %s3
  loop: start=0, step=1, limit=6
  $region2: #{tpu_custom_call.1} parent=0 // loop_pre_header
    _
  $region3: #{tpu_custom_call.1} parent=0 // loop_header
    %s8 = sphi 0, %s12
    %p9 = scmp.ge.s32.totalorder %s8, 6
    %s18 = sphi 0, %s20
    %s21 = sphi 0, %s18
    %s22 = sphi 0, %s21
    %s38 = sphi 0, %s22
    %s44 = sphi 0, %s46
    %s47 = sphi 0, %s44
    %s48 = sphi 0, %s47
    %s64 = sphi 0, %s48
    %s70 = sphi 0, %s72
    %s73 = sphi 0, %s70
    %s74 = sphi 0, %s73
    %s90 = sphi 0, %s74
  $region4: #{tpu_custom_call.1} parent=0 // loop_header_branch
    %11 = sbr.rel (%p9) target = $region8
  $region5: #{tpu_custom_call.1} parent=0 // loop_body
    %s13 = ssub.s32 %s8, 1
    %s14 = ssub.s32 %s8, 2
    %s15 = sadd.s32 %s8, 1
    %s16 = ssub.s32 %s8, %s15
    %p17 = scmp.eq.s32.totalorder %s16, 0
    %s19 = sadd.s32 %s18, 1
    %s20 = scalar_select %p17, %s18, %s19
    %p23 = pneg %p17
    %p24 = scmp.eq.s32.totalorder %s8, 3
    %p25 = por %p23, %p24
    %p26 = scmp.ne.s32.totalorder %s18, %s21
    %p27 = scmp.eq.s32.totalorder %s8, 0
    %p28 = por %p26, %p27
    %p29 = scmp.ne.s32.totalorder %s18, %s21
    %p30 = scmp.eq.s32.totalorder %s13, 3
    %p31 = por %p29, %p30
    %p32 = scmp.ne.s32.totalorder %s21, %s22
    %p33 = scmp.eq.s32.totalorder %s13, 0
    %p34 = por %p32, %p33
    %p35 = scmp.ne.s32.totalorder %s21, %s22
    %p36 = scmp.eq.s32.totalorder %s14, 3
    %p37 = por %p35, %p36
    %p39 = scmp.ne.s32.totalorder %s22, %s38
    %p40 = scmp.eq.s32.totalorder %s14, 0
    %p41 = por %p39, %p40
    %s42 = ssub.s32 %s8, %s15
    %p43 = scmp.eq.s32.totalorder %s42, 0
    %s45 = sadd.s32 %s44, 1
    %s46 = scalar_select %p43, %s44, %s45
    %p49 = pneg %p43
    %p50 = scmp.eq.s32.totalorder %s8, 3
    %p51 = por %p49, %p50
    %p52 = scmp.ne.s32.totalorder %s44, %s47
    %p53 = scmp.eq.s32.totalorder %s8, 0
    %p54 = por %p52, %p53
    %p55 = scmp.ne.s32.totalorder %s44, %s47
    %p56 = scmp.eq.s32.totalorder %s13, 3
    %p57 = por %p55, %p56
    %p58 = scmp.ne.s32.totalorder %s47, %s48
    %p59 = scmp.eq.s32.totalorder %s13, 0
    %p60 = por %p58, %p59
    %p61 = scmp.ne.s32.totalorder %s47, %s48
    %p62 = scmp.eq.s32.totalorder %s14, 3
    %p63 = por %p61, %p62
    %p65 = scmp.ne.s32.totalorder %s48, %s64
    %p66 = scmp.eq.s32.totalorder %s14, 0
    %p67 = por %p65, %p66
    %s68 = ssub.s32 %s8, %s15
    %p69 = scmp.eq.s32.totalorder %s68, 0
    %s71 = sadd.s32 %s70, 1
    %s72 = scalar_select %p69, %s70, %s71
    %p75 = pneg %p69
    %p76 = scmp.eq.s32.totalorder %s8, 3
    %p77 = por %p75, %p76
    %p78 = scmp.ne.s32.totalorder %s70, %s73
    %p79 = scmp.eq.s32.totalorder %s8, 0
    %p80 = por %p78, %p79
    %p81 = scmp.ne.s32.totalorder %s70, %s73
    %p82 = scmp.eq.s32.totalorder %s13, 3
    %p83 = por %p81, %p82
    %p84 = scmp.ne.s32.totalorder %s73, %s74
    %p85 = scmp.eq.s32.totalorder %s13, 0
    %p86 = por %p84, %p85
    %p87 = scmp.ne.s32.totalorder %s73, %s74
    %p88 = scmp.eq.s32.totalorder %s14, 3
    %p89 = por %p87, %p88
    %p91 = scmp.ne.s32.totalorder %s74, %s90
    %p92 = scmp.eq.s32.totalorder %s14, 0
    %p93 = por %p91, %p92
    %p94 = scmp.le.s32.totalorder 1, %s8
    %p95 = scmp.lt.s32.totalorder %s8, 5
    %p96 = pnand %p94, %p95
    %p97 = pneg %p96
    // Predicated region
    $region9: #{tpu_custom_call.1} parent=5 // pred_check
      _
    $region10: #{tpu_custom_call.1} parent=5 // pred_check_branch
      %99 = sbr.rel (%p96) target = $region12
    $region11: #{tpu_custom_call.1} parent=5 // pred_region
      %s100 = ssub.s32 %s8, 1
    $region12: #{tpu_custom_call.1} parent=5 // pred_fallthru
      _
    %p101 = scmp.lt.s32.totalorder %s8, 4
    // Predicated region
    $region13: #{tpu_custom_call.1} parent=5 // pred_check
      %p102 = pneg %p101
    $region14: #{tpu_custom_call.1} parent=5 // pred_check_branch
      %104 = sbr.rel (%p102) target = $region16
    $region15: #{tpu_custom_call.1} parent=5 // pred_region
      // Predicated region
      $region17: #{tpu_custom_call.1} parent=15 // pred_check
        %p105 = pneg %p28
      $region18: #{tpu_custom_call.1} parent=15 // pred_check_branch
        %107 = sbr.rel (%p105) target = $region20
      $region19: #{tpu_custom_call.1} parent=15 // pred_region
        %s108 = smul.u32 2, %s8
        %p109 = scmp.lt.s32.totalorder %s108, 7
        %s110 = scalar_select %p109, %s108, 7
        %s111 = smul.addr %s110, 8
        %s112 = scalar_lea.vmem %s0, %s111
        %s113 = smul.u32 2, %s8
      $region20: #{tpu_custom_call.1} parent=15 // pred_fallthru
        _
      // Predicated region
      $region21: #{tpu_custom_call.1} parent=15 // pred_check
        %p114 = pneg %p54
      $region22: #{tpu_custom_call.1} parent=15 // pred_check_branch
        %116 = sbr.rel (%p114) target = $region24
      $region23: #{tpu_custom_call.1} parent=15 // pred_region
        %s117 = smul.u32 2, %s8
        %p118 = scmp.lt.s32.totalorder %s117, 7
        %s119 = scalar_select %p118, %s117, 7
        %s120 = smul.addr %s119, 8
        %s121 = scalar_lea.vmem %s1, %s120
        %s122 = smul.u32 2, %s8
      $region24: #{tpu_custom_call.1} parent=15 // pred_fallthru
        _
    $region16: #{tpu_custom_call.1} parent=5 // pred_fallthru
      _
    %p123 = scmp.le.s32.totalorder 1, %s8
    %p124 = scmp.lt.s32.totalorder %s8, 5
    %p125 = pnand %p123, %p124
    %p126 = pneg %p125
    // Predicated region
    $region25: #{tpu_custom_call.1} parent=5 // pred_check
      _
    $region26: #{tpu_custom_call.1} parent=5 // pred_check_branch
      %128 = sbr.rel (%p125) target = $region28
    $region27: #{tpu_custom_call.1} parent=5 // pred_region
      %s129 = ssub.s32 %s8, 1
      %s130 = smul.u32 2, %s13
      %p131 = scmp.lt.s32.totalorder %s130, 7
      %s132 = scalar_select %p131, %s130, 7
      %s133 = smul.addr %s132, 8
      %s134 = scalar_lea.vmem %s0, %s133
      %p135 = pneg %p34
      %p136 = pneg %p31
      %s137 = smul.u32 2, %s13
      %p138 = scmp.lt.s32.totalorder %s137, 7
      %s139 = scalar_select %p138, %s137, 7
      %s140 = smul.addr %s139, 8
      %s141 = scalar_lea.vmem %s1, %s140
      %p142 = pneg %p60
      %p143 = pneg %p57
      %p144 = pneg %p86
      %p145 = pneg %p83
      %s146 = smul.u32 2, %s13
      %p147 = scmp.lt.s32.totalorder %s146, 7
      %s148 = scalar_select %p147, %s146, 7
      %s149 = smul.addr %s148, 8
      %s150 = scalar_lea.vmem %s2, %s149
      %s151 = smul.u32 2, %s13
      %p152 = scmp.lt.s32.totalorder %s151, 7
      %s153 = scalar_select %p152, %s151, 7
      %s154 = smul.addr %s153, 8
      %s155 = scalar_lea.vmem %s0, %s154
      %s156 = smul.u32 2, %s13
      %s157 = smul.u32 2, %s13
      %p158 = scmp.lt.s32.totalorder %s157, 7
      %s159 = scalar_select %p158, %s157, 7
      %s160 = smul.addr %s159, 8
      %s161 = scalar_lea.vmem %s1, %s160
      %s162 = smul.u32 2, %s13
      %s163 = smul.u32 2, %s13
      %p164 = scmp.lt.s32.totalorder %s163, 7
      %s165 = scalar_select %p164, %s163, 7
      %s166 = smul.addr %s165, 8
      %s167 = scalar_lea.vmem %s2, %s166
      %s168 = smul.u32 2, %s13
      %v169 = vld [vmem:[%s155] sm:$0xff]
      %v170 = vld [vmem:[%s155 + $0x8] sm:$0xff]
      %v171 = vmul.f32 %v169, 0.25
      %v172 = vmul.f32 %v170, 0.25
      %v173 = vld [vmem:[%s161] sm:$0xff]
      %v174 = vld [vmem:[%s161 + $0x8] sm:$0xff]
      %v175 = vmul.f32 %v173, 0.25
      %v176 = vmul.f32 %v174, 0.25
      %vm177 = vcmask 80896
      %v178 = vsel %vm177, %v171, -inf
      %179 = vmax.xlane.f32.xlu0 %v178
      %v180 = vpop.xlane.xlu0 %179
      %v181 = vsel %vm177, %v172, -inf
      %182 = vmax.xlane.f32.xlu0 %v181
      %v183 = vpop.xlane.xlu0 %182
      %v184 = vsub.f32 %v171, %v180
      %v185 = vsub.f32 %v172, %v183
      %v186 = vmul.f32 %v184, 1.442695
      %v187 = vpow.pop %v186
      %v188 = vmul.f32 %v185, 1.442695
      %v189 = vpow.pop %v188
      %v190 = vsel %vm177, %v187, 0.0
      %191 = vadd.xlane.f32.xlu0 %v190
      %v192 = vpop.xlane.xlu0 %191
      %v193 = vsel %vm177, %v189, 0.0
      %194 = vadd.xlane.f32.xlu0 %v193
      %v195 = vpop.xlane.xlu0 %194
      %v196 = vlog2.pop %v192
      %v197 = vmul.f32 %v196, 0.6931472
      %v198 = vlog2.pop %v195
      %v199 = vmul.f32 %v198, 0.6931472
      %v200 = vsel %vm177, %v175, -inf
      %201 = vmax.xlane.f32.xlu0 %v200
      %v202 = vpop.xlane.xlu0 %201
      %v203 = vsel %vm177, %v176, -inf
      %204 = vmax.xlane.f32.xlu0 %v203
      %v205 = vpop.xlane.xlu0 %204
      %v206 = vsub.f32 %v175, %v202
      %v207 = vsub.f32 %v176, %v205
      %v208 = vmul.f32 %v206, 1.442695
      %v209 = vpow.pop %v208
      %v210 = vmul.f32 %v207, 1.442695
      %v211 = vpow.pop %v210
      %v212 = vsel %vm177, %v209, 0.0
      %213 = vadd.xlane.f32.xlu0 %v212
      %v214 = vpop.xlane.xlu0 %213
      %v215 = vsel %vm177, %v211, 0.0
      %216 = vadd.xlane.f32.xlu0 %v215
      %v217 = vpop.xlane.xlu0 %216
      %v218 = vlog2.pop %v214
      %v219 = vmul.f32 %v218, 0.6931472
      %v220 = vlog2.pop %v217
      %v221 = vmul.f32 %v220, 0.6931472
      %v222 = vrcp.pop %v214
      %v223 = vrcp.pop %v217
      %v224 = vmul.f32 %v209, %v222
      %v225 = vmul.f32 %v211, %v223
      %v226 = vsub.f32 %v206, %v184
      %v227 = vsub.f32 %v207, %v185
      %v228 = vsub.f32 %v197, %v219
      %v229 = vsub.f32 %v199, %v221
      %v230 = vadd.f32 %v226, %v228
      %v231 = vadd.f32 %v227, %v229
      %v232 = vmul.f32 %v224, %v230
      %v233 = vmul.f32 %v225, %v231
      %v234 = vsel %vm177, %v232, 0.0
      %235 = vadd.xlane.f32.xlu0 %v234
      %v236 = vpop.xlane.xlu0 %235
      %v237 = vsel %vm177, %v233, 0.0
      %238 = vadd.xlane.f32.xlu0 %v237
      %v239 = vpop.xlane.xlu0 %238
      %vm240 = vcmask 7168
      %241 = vst.msk [vmem:[%s167] sm:$0xff] %vm240, %v236
      %242 = vst.msk [vmem:[%s167 + $0x8] sm:$0xff] %vm240, %v239
      %s243 = smul.u32 2, %s13
      %p244 = scmp.lt.s32.totalorder %s243, 7
      %s245 = scalar_select %p244, %s243, 7
      %s246 = smul.addr %s245, 8
      %s247 = scalar_lea.vmem %s2, %s246
      // Predicated region
      $region29: #{tpu_custom_call.1} parent=27 // pred_check
        %p248 = pneg %p83
      $region30: #{tpu_custom_call.1} parent=27 // pred_check_branch
        %250 = sbr.rel (%p248) target = $region32
      $region31: #{tpu_custom_call.1} parent=27 // pred_region
        %s251 = smul.u32 2, %s13
      $region32: #{tpu_custom_call.1} parent=27 // pred_fallthru
        _
    $region28: #{tpu_custom_call.1} parent=5 // pred_fallthru
      _
    %p252 = scmp.le.s32.totalorder 2, %s8
    // Predicated region
    $region33: #{tpu_custom_call.1} parent=5 // pred_check
      %p253 = pneg %p252
    $region34: #{tpu_custom_call.1} parent=5 // pred_check_branch
      %255 = sbr.rel (%p253) target = $region36
    $region35: #{tpu_custom_call.1} parent=5 // pred_region
      %s256 = ssub.s32 %s8, 2
      // Predicated region
      $region37: #{tpu_custom_call.1} parent=35 // pred_check
        %p257 = pneg %p89
      $region38: #{tpu_custom_call.1} parent=35 // pred_check_branch
        %259 = sbr.rel (%p257) target = $region40
      $region39: #{tpu_custom_call.1} parent=35 // pred_region
        %s260 = smul.u32 2, %s14
        %p261 = scmp.lt.s32.totalorder %s260, 7
        %s262 = scalar_select %p261, %s260, 7
        %s263 = smul.addr %s262, 8
        %s264 = scalar_lea.vmem %s2, %s263
      $region40: #{tpu_custom_call.1} parent=35 // pred_fallthru
        _
    $region36: #{tpu_custom_call.1} parent=5 // pred_fallthru
      _
  $region6: #{tpu_custom_call.1} parent=0 // loop_footer
    %s12 = sadd.s32 1, %s8
  $region7: #{tpu_custom_call.1} parent=0 // loop_footer_branch
    %7 = sbr.rel target = $region3
  $region8: #{tpu_custom_call.1} parent=0 // loop_exit
    _

</llo_original>
